<compile_context>
chip_gen: v5e
topology: v5e:2x2
jax: 0.10.0
libtpu: 0.0.40
codegen_flags: <defaults>
</compile_context>

<pallas_src>
from typing import NamedTuple

import jax
import jax.numpy as jnp
from jax.experimental import pallas as pl
from jax.experimental.pallas import tpu as pltpu

_LANE = 128
_SUBLANE = 8
_MIB = 1024 * 1024


def _round_up(x, m):
    return ((x + m - 1) // m) * m


def _tpu_vmem_capacity_bytes():
    try:
        info = pltpu.get_tpu_info()
        cap = getattr(info, "vmem_capacity_bytes", None)
        if cap:
            return int(cap)
    except Exception:
        pass
    return 128 * _MIB  # conservative default (v5e/v6e class)


def _vmem_budget_bytes(vmem_capacity):
    # v5e/v6e: 128 MiB physical -> allow up to ~96 MiB scoped.
    # v7x:      64 MiB physical -> stay near the 32 MiB scoped default.
    if vmem_capacity >= 100 * _MIB:
        return 96 * _MIB
    return 36 * _MIB


def _is_multi_core_chip(vmem_capacity):
    # v7x (2 TensorCores per chip) is the generation with 64 MiB VMEM per TC.
    return vmem_capacity < 100 * _MIB


def _pick_tile(padded_dim, cap, prefer_align=256, min_align=_LANE):
    """Largest tile <= cap that exactly divides padded_dim.

    Prefers 256-aligned tiles (full 256-wide MXU passes on v6e/v7x), falls back
    to 128-aligned. padded_dim is always a multiple of 128.
    """
    for align in (prefer_align, min_align):
        if align > cap or padded_dim % align != 0:
            continue
        best = 0
        d = align
        while d <= min(cap, padded_dim):
            if padded_dim % d == 0:
                best = d
            d += align
        if best:
            return best
    return min(padded_dim, min_align)


def _linear_kernel(x_ref, w_ref, b_ref, o_ref, acc_ref):
    k = pl.program_id(2)

    @pl.when(k == 0)
    def _init():
        acc_ref[...] = jnp.zeros_like(acc_ref)

    # bf16 (or f32) operands, f32 MXU accumulation into the VMEM scratch.
    acc_ref[...] += jnp.dot(
        x_ref[...], w_ref[...], preferred_element_type=jnp.float32
    )

    @pl.when(k == pl.num_programs(2) - 1)
    def _finalize():
        # Bias added once, on the f32 accumulator (cheap epilogue).
        o_ref[...] = (acc_ref[...] + b_ref[...]).astype(o_ref.dtype)


class LinearParams(NamedTuple):
    weight_t: jax.Array   # (Kp, Np), operand dtype (bf16 default), zero padded
    bias: jax.Array       # (1, Np), float32, zero padded
    in_features: int      # K
    out_features: int     # N


def prepare_linear_params(weight_t, bias, operand_dtype=jnp.bfloat16):
    """Pad weights/bias to lane multiples and cast operands ONCE (hoisted out
    of the per-call path — weights are static)."""
    K, N = weight_t.shape
    Kp, Np = _round_up(K, _LANE), _round_up(N, _LANE)
    w = weight_t
    if (Kp, Np) != (K, N):
        w = jnp.pad(w, ((0, Kp - K), (0, Np - N)))
    w = w.astype(operand_dtype)
    b = bias.astype(jnp.float32).reshape(1, N)
    if Np != N:
        b = jnp.pad(b, ((0, 0), (0, Np - N)))
    return LinearParams(w, b, K, N)


def _pallas_linear(x_padded, weight_t, bias2, mn, out_dtype, tm, tn, tk):
    Mp, Kp = x_padded.shape
    _, Np = weight_t.shape
    M, N = mn
    grid = (Mp // tm, Np // tn, Kp // tk)

    op_bytes = jnp.dtype(weight_t.dtype).itemsize
    out_bytes = jnp.dtype(out_dtype).itemsize
    # double-buffered x/W tiles + bias + double-buffered output + f32 acc.
    footprint = (2 * tm * tk * op_bytes + 2 * tk * tn * op_bytes
                 + 2 * tn * 4 + 2 * tm * tn * out_bytes + tm * tn * 4)
    vmem_capacity = _tpu_vmem_capacity_bytes()
    vmem_limit = int(min(max(2 * footprint, 16 * _MIB),
                         _vmem_budget_bytes(vmem_capacity)))

    out = pl.pallas_call(
        _linear_kernel,
        out_shape=jax.ShapeDtypeStruct((Mp, Np), out_dtype),
        grid_spec=pltpu.PrefetchScalarGridSpec(
            num_scalar_prefetch=0,
            grid=grid,
            in_specs=[
                pl.BlockSpec((tm, tk), lambda i, j, k: (i, k)),
                pl.BlockSpec((tk, tn), lambda i, j, k: (k, j)),
                pl.BlockSpec((1, tn), lambda i, j, k: (0, j)),
            ],
            out_specs=pl.BlockSpec((tm, tn), lambda i, j, k: (i, j)),
            scratch_shapes=[pltpu.VMEM((tm, tn), jnp.float32)],
        ),
        compiler_params=pltpu.CompilerParams(
            dimension_semantics=("parallel", "parallel", "arbitrary"),
            vmem_limit_bytes=vmem_limit,
        ),
        cost_estimate=pl.CostEstimate(
            flops=2 * Mp * Np * Kp,
            bytes_accessed=(op_bytes * (Mp * Kp + Kp * Np)
                            + out_bytes * Mp * Np + 4 * Np),
            transcendentals=0,
        ),
    )(x_padded, weight_t, bias2)

    if (Mp, Np) != (M, N):
        out = out[:M, :N]
    return out


def linear_forward(x, params: LinearParams, *, out_dtype=jnp.float32,
                   tm=512, tn=512, tk=512, force_pallas=False):
    """LinearModel.forward: x @ W^T + b (weight stored transposed, prepared)."""
    M, K = x.shape
    assert K == params.in_features
    N = params.out_features
    Kp, Np = params.weight_t.shape

    # Below ~128x512x512 MACs, fixed pallas_call + grid-step overhead dominates:
    # let XLA fuse the tiny matmul instead.
    if not force_pallas and (M * K * N < 128 * 512 * 512):
        wt = params.weight_t[:K, :N]
        out = jnp.dot(x.astype(wt.dtype), wt,
                      preferred_element_type=jnp.float32) + params.bias[0, :N]
        return out.astype(out_dtype)

    vmem_capacity = _tpu_vmem_capacity_bytes()

    # Tile selection: sublane-aligned tm, divisor-aligned tn/tk (no pad waste).
    tm = min(tm, _round_up(M, _SUBLANE))
    tn = _pick_tile(Np, tn)
    tk = _pick_tile(Kp, tk)
    Mp = _round_up(M, tm)

    # v7x has 2 TensorCores: guarantee >= 2 blocks along a parallel axis.
    if (_is_multi_core_chip(vmem_capacity)
            and (Mp // tm) * (Np // tn) < 2 and Np // _LANE >= 2):
        tn = _pick_tile(Np, max(tn // 2, _LANE))

    x_p = x
    if (Mp, Kp) != (M, K):
        x_p = jnp.pad(x, ((0, Mp - M), (0, Kp - K)))
    x_p = x_p.astype(params.weight_t.dtype)

    return _pallas_linear(x_p, params.weight_t, params.bias,
                          (M, N), out_dtype, tm, tn, tk)


def init_linear_params(key, input_size, output_size):
    """Mirror the PyTorch module:
    - weight: xavier_uniform_ over shape (output_size, input_size)
    - bias: default nn.Linear init, U(-1/sqrt(fan_in), 1/sqrt(fan_in))
    Returned weight is stored transposed (input_size, output_size) so the
    kernel computes x @ W_t == x @ weight.T in torch.
    """
    kw, kb = jax.random.split(key)
    bound_w = (6.0 / (input_size + output_size)) ** 0.5
    weight = jax.random.uniform(
        kw, (output_size, input_size), jnp.float32, -bound_w, bound_w)
    bound_b = 1.0 / (input_size ** 0.5)
    bias = jax.random.uniform(
        kb, (output_size,), jnp.float32, -bound_b, bound_b)
    return weight.T, bias


if __name__ == "__main__":
    key = jax.random.PRNGKey(0)
    kx, kp, kx2, kp2 = jax.random.split(key, 4)

    # Small case matching the module's implied shapes; force the Pallas path so
    # the kernel itself is exercised (single (8,128)x(128,128) block).
    batch, input_size, output_size = 8, 32, 64
    x = jax.random.normal(kx, (batch, input_size), jnp.float32)
    w_t, b = init_linear_params(kp, input_size, output_size)
    params = prepare_linear_params(w_t, b)  # pad + bf16 cast once (hoisted)
    out_small = jax.block_until_ready(
        linear_forward(x, params, force_pallas=True))
    ref_small = (jnp.dot(x, w_t, precision=jax.lax.Precision.HIGHEST)
                 + b[None, :])
    assert out_small.shape == (batch, output_size)
    assert out_small.dtype == jnp.float32
    assert jnp.allclose(out_small, ref_small, atol=3e-2, rtol=3e-2), (
        float(jnp.max(jnp.abs(out_small - ref_small))))

    # Larger case: multi-step K accumulation (bias only on the final K step),
    # divisor-aligned tiles (tk divides 768 exactly -> no zero-padding waste).
    M, K, N = 256, 768, 512
    x2 = jax.random.normal(kx2, (M, K), jnp.float32)
    w2_t, b2 = init_linear_params(kp2, K, N)
    params2 = prepare_linear_params(w2_t, b2)
    out_big = jax.block_until_ready(linear_forward(x2, params2))
    ref_big = (jnp.dot(x2, w2_t, precision=jax.lax.Precision.HIGHEST)
               + b2[None, :])
    assert out_big.shape == (M, N)
    # bf16 operand / f32 accumulate tolerance.
    assert jnp.allclose(out_big, ref_big, atol=5e-2, rtol=5e-2), (
        float(jnp.max(jnp.abs(out_big - ref_big))))

    print("KERNEL_OK")
</pallas_src>

<mosaic_0001>
module attributes {stable_mosaic.version = 11 : i64} {
  func.func @_linear_kernel(%arg0: i32, %arg1: i32, %arg2: i32, %arg3: memref<8x128xbf16, #tpu.memory_space<vmem>>, %arg4: memref<128x128xbf16, #tpu.memory_space<vmem>>, %arg5: memref<1x128xf32, #tpu.memory_space<vmem>>, %arg6: memref<8x128xf32, #tpu.memory_space<vmem>>, %arg7: memref<8x128xf32, #tpu.memory_space<vmem>>) attributes {dimension_semantics = [#tpu.dimension_semantics<parallel>, #tpu.dimension_semantics<parallel>, #tpu.dimension_semantics<arbitrary>], iteration_bounds = array<i64: 1, 1, 1>, scalar_prefetch = 0 : i64, scratch_operands = 1 : i64, tpu.core_type = #tpu.core_type<tc>, window_params = [{transform_indices = @transform_0, window_bounds = array<i64: 8, 128>}, {transform_indices = @transform_1, window_bounds = array<i64: 128, 128>}, {transform_indices = @transform_2, window_bounds = array<i64: 1, 128>}, {transform_indices = @transform_3, window_bounds = array<i64: 8, 128>}]} {
    %c0_i32 = arith.constant 0 : i32
    %0 = arith.cmpi eq, %arg2, %c0_i32 : i32
    %1 = arith.extui %0 : i1 to i32
    %c0_i32_0 = arith.constant 0 : i32
    %2 = arith.cmpi ne, %1, %c0_i32_0 : i32
    scf.if %2 {
      %cst_10 = arith.constant 0.000000e+00 : f32
      %12 = vector.broadcast %cst_10 : f32 to vector<8x128xf32>
      %c0_11 = arith.constant 0 : index
      %c0_12 = arith.constant 0 : index
      %13 = vector.load %arg7[%c0_11, %c0_12] : memref<8x128xf32, #tpu.memory_space<vmem>>, vector<8x128xf32>
      tpu.vector_store %arg7[%c0_11, %c0_12], %12 {strides = array<i32>} : memref<8x128xf32, #tpu.memory_space<vmem>>, vector<8x128xf32>,
    } else {
    }
    %c0 = arith.constant 0 : index
    %c0_1 = arith.constant 0 : index
    %3 = vector.load %arg7[%c0, %c0_1] : memref<8x128xf32, #tpu.memory_space<vmem>>, vector<8x128xf32>
    %c0_2 = arith.constant 0 : index
    %c0_3 = arith.constant 0 : index
    %4 = vector.load %arg3[%c0_2, %c0_3] : memref<8x128xbf16, #tpu.memory_space<vmem>>, vector<8x128xbf16>
    %c0_4 = arith.constant 0 : index
    %c0_5 = arith.constant 0 : index
    %5 = vector.load %arg4[%c0_4, %c0_5] : memref<128x128xbf16, #tpu.memory_space<vmem>>, vector<128x128xbf16>
    %cst = arith.constant dense<0.000000e+00> : vector<8x128xf32>
    %6 = tpu.matmul %4, %5, %cst {dimension_numbers = #tpu.dot_dimension_numbers<[1], [0], [0], [1], [0, 0, 1, 1], [], []>} : vector<8x128xbf16>, vector<128x128xbf16>, vector<8x128xf32> -> vector<8x128xf32>
    %7 = arith.addf %3, %6 : vector<8x128xf32>
    %c0_6 = arith.constant 0 : index
    %c0_7 = arith.constant 0 : index
    %8 = vector.load %arg7[%c0_6, %c0_7] : memref<8x128xf32, #tpu.memory_space<vmem>>, vector<8x128xf32>
    tpu.vector_store %arg7[%c0_6, %c0_7], %7 {strides = array<i32>} : memref<8x128xf32, #tpu.memory_space<vmem>>, vector<8x128xf32>,
    %c0_i32_8 = arith.constant 0 : i32
    %9 = arith.cmpi eq, %arg2, %c0_i32_8 : i32
    %10 = arith.extui %9 : i1 to i32
    %c0_i32_9 = arith.constant 0 : i32
    %11 = arith.cmpi ne, %10, %c0_i32_9 : i32
    scf.if %11 {
      %c0_10 = arith.constant 0 : index
      %c0_11 = arith.constant 0 : index
      %12 = vector.load %arg7[%c0_10, %c0_11] : memref<8x128xf32, #tpu.memory_space<vmem>>, vector<8x128xf32>
      %c0_12 = arith.constant 0 : index
      %c0_13 = arith.constant 0 : index
      %13 = vector.load %arg5[%c0_12, %c0_13] : memref<1x128xf32, #tpu.memory_space<vmem>>, vector<1x128xf32>
      %14 = vector.broadcast %13 : vector<1x128xf32> to vector<8x128xf32>
      %15 = arith.addf %12, %14 : vector<8x128xf32>
      %c0_14 = arith.constant 0 : index
      %c0_15 = arith.constant 0 : index
      %16 = vector.load %arg6[%c0_14, %c0_15] : memref<8x128xf32, #tpu.memory_space<vmem>>, vector<8x128xf32>
      tpu.vector_store %arg6[%c0_14, %c0_15], %15 {strides = array<i32>} : memref<8x128xf32, #tpu.memory_space<vmem>>, vector<8x128xf32>,
    } else {
    }
    return
  }
  func.func @transform_0(%arg0: i32, %arg1: i32, %arg2: i32) -> (i32, i32) {
    %c0_i32 = arith.constant 0 : i32
    return %arg0, %arg2 : i32, i32
  }
  func.func @transform_1(%arg0: i32, %arg1: i32, %arg2: i32) -> (i32, i32) {
    %c0_i32 = arith.constant 0 : i32
    return %arg2, %arg1 : i32, i32
  }
  func.func @transform_2(%arg0: i32, %arg1: i32, %arg2: i32) -> (i32, i32) {
    %c0_i32 = arith.constant 0 : i32
    %c0_i32_0 = arith.constant 0 : i32
    return %c0_i32, %arg1 : i32, i32
  }
  func.func @transform_3(%arg0: i32, %arg1: i32, %arg2: i32) -> (i32, i32) {
    %c0_i32 = arith.constant 0 : i32
    return %arg0, %arg1 : i32, i32
  }
}

</mosaic_0001>

<llo_original>
// kernel: tpu_custom_call.1
$region0: #{tpu_custom_call.1}
  #allocation0 [shape = 'u32[]', space=smem, size = 0x4, offset = 0x4, fixed_abs, tag = 'smem constant byte address 0x4 - core index']
  #allocation1 [shape = 'u32[72,128]{1,0:T(1,128)}', space=vmem, size = 0x9000, scoped, tag = 'internal scratch']
  #allocation2 [shape = 'f32[8,128]{1,0:T(8,128)}', space=vmem, size = 0x1000, scoped, tag = 'scratch operand']
  %s0 = inlined_call_operand.hbm [shape: bf16[8,128], index: 0, kind: input, shape index: {}]
  %s1 = inlined_call_operand.hbm [shape: bf16[128,128], index: 1, kind: input, shape index: {}]
  %s2 = inlined_call_operand.vmem [shape: f32[1,128], index: 2, kind: input, shape index: {}]
  %s3 = inlined_call_operand.hbm [shape: f32[8,128], index: 3, kind: output, shape index: {}]
  %s4 = sld [smem:[#allocation0]]
  $region38: #{tpu_custom_call.1} parent=0
    _
  %s6 = ssub.s32 1, %s4
  %s7 = scalar_select 0, %s6, %s4
  $region1: #{tpu_custom_call.1} parent=0
    #allocation3 [shape = 'u8[2048]{0}', space=vmem, size = 0x800, scoped, tag = 'input window, operand 0, single buffered']
    #allocation4 [shape = 's32[1]{0}', space=sflag, size = 0x4, scoped, tag = 'scoped memory for tpu_custom_call.1']
    #allocation5 [shape = 's32[1]{0}', space=sflag, size = 0x4, scoped, tag = 'scoped memory for tpu_custom_call.1']
    #allocation6 [shape = 'u8[32768]{0}', space=vmem, size = 0x8000, scoped, tag = 'input window, operand 1, single buffered']
    #allocation7 [shape = 's32[1]{0}', space=sflag, size = 0x4, scoped, tag = 'scoped memory for tpu_custom_call.1']
    #allocation8 [shape = 'u8[4096]{0}', space=vmem, size = 0x1000, scoped, tag = 'output window, operand 0, single buffered']
    %8 = vsyncpa [#allocation4], 0
    %9 = vsyncpa [#allocation7], 0
    %10 = vsyncpa [#allocation5], 0
    // Predicated region
    $region2: #{tpu_custom_call.1} parent=1 // pred_check
      _
    $region3: #{tpu_custom_call.1} parent=1 // pred_check_branch
      %12 = sbr.rel (0) target = $region5
    $region4: #{tpu_custom_call.1} parent=1 // pred_region
      %14 = vsyncadd [#allocation4], 0
      %s16 = sshll.u32 %s0, 4
      %s17 = int_to_ptr.hbm [resolvable:$true] %s16
      %s18 = sshll.u32 [#allocation3], 4
      %s19 = int_to_ptr.vmem [resolvable:$true] %s18
      %21 = dma.hbm_to_vmem [thread:$0]  %s17, 64, %s19, [#allocation4]
    $region5: #{tpu_custom_call.1} parent=1 // pred_fallthru
      _
    // Predicated region
    $region6: #{tpu_custom_call.1} parent=1 // pred_check
      _
    $region7: #{tpu_custom_call.1} parent=1 // pred_check_branch
      %23 = sbr.rel (0) target = $region9
    $region8: #{tpu_custom_call.1} parent=1 // pred_region
      %25 = vsyncadd [#allocation7], 0
      %s26 = sshll.u32 %s1, 4
      %s27 = int_to_ptr.hbm [resolvable:$true] %s26
      %s28 = sshll.u32 [#allocation6], 4
      %s29 = int_to_ptr.vmem [resolvable:$true] %s28
      %34 = dma.hbm_to_vmem [thread:$0]  %s27, 1024, %s29, [#allocation7], 64, 64, 4
    $region9: #{tpu_custom_call.1} parent=1 // pred_fallthru
      _
    // Predicated region
    $region10: #{tpu_custom_call.1} parent=1 // pred_check
      _
    $region11: #{tpu_custom_call.1} parent=1 // pred_check_branch
      %36 = sbr.rel (0) target = $region13
    $region12: #{tpu_custom_call.1} parent=1 // pred_region
      _
    $region13: #{tpu_custom_call.1} parent=1 // pred_fallthru
      _
    // Predicated region
    $region14: #{tpu_custom_call.1} parent=1 // pred_check
      _
    $region15: #{tpu_custom_call.1} parent=1 // pred_check_branch
      %38 = sbr.rel (0) target = $region17
    $region16: #{tpu_custom_call.1} parent=1 // pred_region
      %40 = dma.done [#allocation4], 64
    $region17: #{tpu_custom_call.1} parent=1 // pred_fallthru
      _
    // Predicated region
    $region18: #{tpu_custom_call.1} parent=1 // pred_check
      _
    $region19: #{tpu_custom_call.1} parent=1 // pred_check_branch
      %42 = sbr.rel (0) target = $region21
    $region20: #{tpu_custom_call.1} parent=1 // pred_region
      %44 = dma.done [#allocation7], 1024
    $region21: #{tpu_custom_call.1} parent=1 // pred_fallthru
      _
    %p45 = scmp.eq.s32.totalorder 0, 0
    // Predicated region
    $region22: #{tpu_custom_call.1} parent=1 // pred_check
      %p46 = pneg %p45
    $region23: #{tpu_custom_call.1} parent=1 // pred_check_branch
      %48 = sbr.rel (%p46) target = $region25
    $region24: #{tpu_custom_call.1} parent=1 // pred_region
      %49 = vst [vmem:[#allocation2] sm:$0xff] 0.0
    $region25: #{tpu_custom_call.1} parent=1 // pred_fallthru
      _
    %v50 = vld [vmem:[#allocation2] sm:$0xff]
    %v51 = vld [vmem:[#allocation3] sm:$0xf]
    %v52 = vld [vmem:[#allocation6] sm:$0xf]
    %v53 = vld [vmem:[#allocation6 + $0x4] sm:$0xf]
    %v54 = vld [vmem:[#allocation6 + $0x8] sm:$0xf]
    %v55 = vld [vmem:[#allocation6 + $0xc] sm:$0xf]
    %v56 = vld [vmem:[#allocation6 + $0x10] sm:$0xf]
    %v57 = vld [vmem:[#allocation6 + $0x14] sm:$0xf]
    %v58 = vld [vmem:[#allocation6 + $0x18] sm:$0xf]
    %v59 = vld [vmem:[#allocation6 + $0x1c] sm:$0xf]
    %v60 = vld [vmem:[#allocation6 + $0x20] sm:$0xf]
    %v61 = vld [vmem:[#allocation6 + $0x24] sm:$0xf]
    %v62 = vld [vmem:[#allocation6 + $0x28] sm:$0xf]
    %v63 = vld [vmem:[#allocation6 + $0x2c] sm:$0xf]
    %v64 = vld [vmem:[#allocation6 + $0x30] sm:$0xf]
    %v65 = vld [vmem:[#allocation6 + $0x34] sm:$0xf]
    %v66 = vld [vmem:[#allocation6 + $0x38] sm:$0xf]
    %v67 = vld [vmem:[#allocation6 + $0x3c] sm:$0xf]
    %v84 = vunpack.c.l.b16 %v52
    %v85 = vunpack.c.l.b16 %v53
    %v86 = vunpack.c.l.b16 %v54
    %v87 = vunpack.c.l.b16 %v55
    %v88 = vunpack.c.l.b16 %v56
    %v89 = vunpack.c.l.b16 %v57
    %v90 = vunpack.c.l.b16 %v58
    %v91 = vunpack.c.l.b16 %v59
    %v92 = vunpack.c.l.b16 %v60
    %v93 = vunpack.c.l.b16 %v61
    %v94 = vunpack.c.l.b16 %v62
    %v95 = vunpack.c.l.b16 %v63
    %v96 = vunpack.c.l.b16 %v64
    %v97 = vunpack.c.l.b16 %v65
    %v98 = vunpack.c.l.b16 %v66
    %v99 = vunpack.c.l.b16 %v67
    %v100 = vpack.c.b16 %v85, %v84
    %v101 = vpack.c.b16 %v87, %v86
    %v102 = vpack.c.b16 %v89, %v88
    %v103 = vpack.c.b16 %v91, %v90
    %v104 = vpack.c.b16 %v93, %v92
    %v105 = vpack.c.b16 %v95, %v94
    %v106 = vpack.c.b16 %v97, %v96
    %v107 = vpack.c.b16 %v99, %v98
    %116 = vmatpush.bf16.msra.mxu0 %v107
    %117 = vmatpush.bf16.msra.mxu0 %v106
    %118 = vmatpush.bf16.msra.mxu0 %v105
    %119 = vmatpush.bf16.msra.mxu0 %v104
    %120 = vmatpush.bf16.msra.mxu0 %v103
    %121 = vmatpush.bf16.msra.mxu0 %v102
    %122 = vmatpush.bf16.msra.mxu0 %v101
    %123 = vmatpush.bf16.msra.mxu0 %v100
    %124 = vmatmul.bf16.gmra.mxu0 %v51
    %v125 = vpop.f32.mrf.mxu0
    %v126 = vadd.f32 0.0, %v125
    %v127 = vpop.f32.mrf.mxu0
    %128 = vdwg.mxu0
    %v129 = vadd.f32 %v50, %v126
    %130 = vst [vmem:[#allocation2] sm:$0xff] %v129
    // Predicated region
    $region26: #{tpu_custom_call.1} parent=1 // pred_check
      %p131 = pneg %p45
    $region27: #{tpu_custom_call.1} parent=1 // pred_check_branch
      %133 = sbr.rel (%p131) target = $region29
    $region28: #{tpu_custom_call.1} parent=1 // pred_region
      %v134 = vld [vmem:[#allocation2] sm:$0xff]
      %v135 = vld [vmem:[%s2] sm:$0x1]
      %v137 = vperm.slane %v135, 0
      %v139 = vadd.f32 %v134, %v137
      %140 = vst [vmem:[#allocation8] sm:$0xff] %v139
    $region29: #{tpu_custom_call.1} parent=1 // pred_fallthru
      _
    // Predicated region
    $region30: #{tpu_custom_call.1} parent=1 // pred_check
      _
    $region31: #{tpu_custom_call.1} parent=1 // pred_check_branch
      %142 = sbr.rel (0) target = $region33
    $region32: #{tpu_custom_call.1} parent=1 // pred_region
      %144 = vsyncadd [#allocation5], 0
      %s146 = sshll.u32 [#allocation8], 4
      %s147 = int_to_ptr.vmem [resolvable:$true] %s146
      %s148 = sshll.u32 %s3, 4
      %s149 = int_to_ptr.hbm [resolvable:$true] %s148
      %151 = dma.vmem_to_hbm [thread:$0]  %s147, 128, %s149, [#allocation5]
    $region33: #{tpu_custom_call.1} parent=1 // pred_fallthru
      _
    // Predicated region
    $region34: #{tpu_custom_call.1} parent=1 // pred_check
      _
    $region35: #{tpu_custom_call.1} parent=1 // pred_check_branch
      %153 = sbr.rel (0) target = $region37
    $region36: #{tpu_custom_call.1} parent=1 // pred_region
      %155 = dma.done [#allocation5], 128
    $region37: #{tpu_custom_call.1} parent=1 // pred_fallthru
      _
    %156 = vsyncpa [#allocation4], 1
    %157 = vsyncpa [#allocation7], 1
    %158 = vsyncpa [#allocation5], 1

</llo_original>
